<compile_context>
chip_gen: v6e
topology: v6e:2x2x1
jax: 0.10.0
libtpu: 0.0.40
codegen_flags: <defaults>
</compile_context>

<pallas_src>
import functools

import jax
import jax.numpy as jnp
from jax import lax
from jax.experimental import pallas as pl
from jax.experimental.pallas import tpu as pltpu


def _phys_reg_kernel(y_hat_ref, y_ref, neg_speed_ref, mask_ref, out_ref,
                     sq_acc, gt_acc, pred_acc, y_last, yh_last, *, sample_num):
    """Grid (batch_tile i, time_tile k): accumulate per-row sums over k and
    emit per-batch-tile partial sums (sq_sum, reg_sum) at the last k."""
    k = pl.program_id(1)                       # time tile ("arbitrary" axis)
    nt = pl.num_programs(1)

    @pl.when(k == 0)
    def _init():
        sq_acc[...] = jnp.zeros_like(sq_acc)
        gt_acc[...] = jnp.zeros_like(gt_acc)
        pred_acc[...] = jnp.zeros_like(pred_acc)
        y_last[...] = jnp.zeros_like(y_last)
        yh_last[...] = jnp.zeros_like(yh_last)

    y_hat = y_hat_ref[...].astype(jnp.float32)            # (TB, TT)
    y = y_ref[...].astype(jnp.float32)                    # (TB, TT)
    neg_speed = neg_speed_ref[...].astype(jnp.float32)    # (TB, 1)
    mask = mask_ref[...]                                   # (1, TT), exact {0,1}

    tb, tt = y_hat.shape

    # ---- MSE partial: per-row sum of squared diffs (padding adds exact 0) ----
    diff = y_hat - y
    sq_acc[...] += jnp.sum(diff * diff, axis=-1, keepdims=True)

    # ---- physical regularization terms ----
    # Boundary between time tiles: global diff index k*tt-1 needs this tile's
    # first column minus the previous tile's last column; it counts iff
    # k > 0 and k*tt < sample_num.  Scalar {0,1} weight; carried columns are
    # zero-initialized so the multiply is NaN-free at k == 0.
    bweight = ((k > 0) & (k * tt < sample_num)).astype(jnp.float32)

    def row_sums(a, last_col_ref):
        # d[:, j] = a[:, j+1] - a[:, j] inside the tile via an XLU roll (no
        # lane-misaligned slice copies).  The wrap-around lane is masked out
        # and covered by the next tile's boundary term.
        d = pltpu.roll(a, tt - 1, 1) - a
        terms = jnp.maximum(d * neg_speed, 0.0) * mask     # implicit broadcasts
        s = jnp.sum(terms, axis=-1, keepdims=True)          # (TB, 1)
        s = s + jnp.maximum((a[:, :1] - last_col_ref[...]) * neg_speed,
                            0.0) * bweight
        last_col_ref[...] = a[:, tt - 1:tt]
        return s

    # TODO(synk): if profiling shows the XLU (rolls + row sums) rather than HBM
    # as the limiter on v6e/v7x, these lane reductions can move to the idle MXU
    # via a dot with a resident ones column.
    gt_acc[...] += row_sums(y, y_last)
    pred_acc[...] += row_sums(y_hat, yh_last)

    @pl.when(k == nt - 1)
    def _finalize():
        # Sum of non-negative relu terms is exactly 0 iff every term is 0, so
        # the exact-equality indicator is tiling-independent.
        indicator = jnp.where(gt_acc[...] == 0.0, 1.0, 0.0)
        sq_sum = jnp.sum(sq_acc[...])
        reg_sum = jnp.sum(indicator * pred_acc[...])
        row = lax.broadcasted_iota(jnp.int32, (8, 128), 0)
        lane = lax.broadcasted_iota(jnp.int32, (8, 128), 1)
        first = row == 0
        out_ref[0] = jnp.where(first & (lane == 0), sq_sum,
                     jnp.where(first & (lane == 1), reg_sum, 0.0))


def _pure_jax_loss(y_hat, y, x, use_reg=True):
    """Plain-JAX path (reference / tiny-problem fallback)."""
    y_hat = y_hat.astype(jnp.float32)
    y = y.astype(jnp.float32)
    mse = jnp.mean((y_hat - y) ** 2)
    if not use_reg:
        return mse
    x = x.astype(jnp.float32)
    sample_num = y_hat.shape[-1] // 2
    speed_sign = jnp.sign(x[..., 1] - x[..., 0])[:, None]

    def phys(a):
        d = a[..., 1:sample_num] - a[..., :sample_num - 1]
        return jnp.mean(jax.nn.relu(d * -speed_sign), axis=-1)

    gt = phys(y)
    ind = jnp.where(gt == 0.0, 1.0, 0.0)
    return mse + jnp.mean(ind * phys(y_hat))


def physical_regularization_loss(y_hat, y, x, use_reg=True, *,
                                 use_pallas=None, tile_rows=None, tile_cols=None):
    """JAX/Pallas equivalent of PhysicalRegularization(use_reg)(y_hat, y, x)."""
    B, T = y_hat.shape
    sample_num = T // 2

    if use_pallas is None:
        # Tiny problems: pallas_call launch/DMA setup dominates -> let XLA fuse.
        use_pallas = (B * T) >= (64 * 1024)
    if (not use_reg) or (not use_pallas) or sample_num < 2:
        # sample_num < 2 gives a mean over an empty axis (NaN), same as PyTorch.
        return _pure_jax_loss(y_hat, y, x, use_reg)

    # Only x[:, 0:2] is needed.
    neg_speed = (-jnp.sign(x[:, 1] - x[:, 0])).astype(jnp.float32)[:, None]   # (B, 1)

    # ---- tile selection ------------------------------------------------------
    # ~2 MiB f32 per input tile: on the measured HBM-roofline plateau for
    # v5e/v6e, and 2 inputs x 2 pipeline buffers + temporaries stay well under
    # v7x's 64 MiB VMEM.  Time is tiled too, so one block never exceeds the
    # budget for very long sequences.
    LANE, SUB = 128, 8
    target_bytes = 2 * 1024 * 1024
    if tile_cols is None:
        max_cols = max(LANE, (target_bytes // (SUB * 4)) // LANE * LANE)
        tile_cols = min(pl.cdiv(T, LANE) * LANE, max_cols)
    tile_cols = int(tile_cols)
    assert tile_cols % LANE == 0
    T_pad = pl.cdiv(T, tile_cols) * tile_cols

    b8 = pl.cdiv(B, SUB) * SUB
    if tile_rows is None:
        tile_rows = max(SUB, (target_bytes // (tile_cols * 4)) // SUB * SUB)
    tile_rows = int(min(int(tile_rows), b8))
    assert tile_rows % SUB == 0
    B_pad = pl.cdiv(B, tile_rows) * tile_rows

    # Zero padding contributes exactly 0 to both accumulated sums.
    pad_r, pad_c = B_pad - B, T_pad - T
    if pad_r or pad_c:
        y_hat = jnp.pad(y_hat, ((0, pad_r), (0, pad_c)))
        y = jnp.pad(y, ((0, pad_r), (0, pad_c)))
    if pad_r:
        neg_speed = jnp.pad(neg_speed, ((0, pad_r), (0, 0)))

    # Precomputed exact {0,1} validity mask (one lane-dense multiply in-kernel):
    # lane g counts iff g < sample_num-1 and it is not a tile's wrap lane.
    g = jnp.arange(T_pad, dtype=jnp.int32)
    mask = (jnp.logical_and(g < sample_num - 1,
                            (g % tile_cols) != tile_cols - 1)
            .astype(jnp.float32))[None, :]                                    # (1, T_pad)

    nb, nt = B_pad // tile_rows, T_pad // tile_cols
    kernel = functools.partial(_phys_reg_kernel, sample_num=sample_num)

    out = pl.pallas_call(
        kernel,
        out_shape=jax.ShapeDtypeStruct((nb, 8, 128), jnp.float32),
        grid_spec=pltpu.PrefetchScalarGridSpec(
            num_scalar_prefetch=0,
            grid=(nb, nt),
            in_specs=[
                pl.BlockSpec((tile_rows, tile_cols), lambda i, k: (i, k)),
                pl.BlockSpec((tile_rows, tile_cols), lambda i, k: (i, k)),
                pl.BlockSpec((tile_rows, 1), lambda i, k: (i, 0)),
                pl.BlockSpec((1, tile_cols), lambda i, k: (0, k)),
            ],
            out_specs=pl.BlockSpec((1, 8, 128), lambda i, k: (i, 0, 0)),
            scratch_shapes=[
                pltpu.VMEM((tile_rows, 1), jnp.float32),   # sq_acc
                pltpu.VMEM((tile_rows, 1), jnp.float32),   # gt_acc
                pltpu.VMEM((tile_rows, 1), jnp.float32),   # pred_acc
                pltpu.VMEM((tile_rows, 1), jnp.float32),   # y last column carry
                pltpu.VMEM((tile_rows, 1), jnp.float32),   # y_hat last column carry
            ],
        ),
        compiler_params=pltpu.CompilerParams(
            # Batch tiles are independent (per-tile partial outputs), so the
            # batch axis can be sharded across v7x's two TensorCores; only the
            # inner time axis carries accumulators.
            dimension_semantics=("parallel", "arbitrary"),
            vmem_limit_bytes=48 * 1024 * 1024,
        ),
    )(y_hat, y, neg_speed, mask)

    # Tiny cross-tile finalize in plain JAX (also avoids the long serial f32
    # drift of a single carried scalar accumulator).
    sq_total = jnp.sum(out[:, 0, 0])
    reg_total = jnp.sum(out[:, 0, 1])
    return sq_total / float(B * T) + reg_total / float(B * (sample_num - 1))


if __name__ == "__main__":
    key = jax.random.PRNGKey(0)
    k1, k2, k3, k4, k5, k6, k7, k8, k9 = jax.random.split(key, 9)

    # Test 1: single-tile path (16 trajectories x 128 time steps, x has 8 cols).
    B, T, Tx = 16, 128, 8
    y_hat = jax.random.normal(k1, (B, T), dtype=jnp.float32)
    y = jax.random.normal(k2, (B, T), dtype=jnp.float32)
    x = jax.random.normal(k3, (B, Tx), dtype=jnp.float32)
    loss = jax.block_until_ready(
        physical_regularization_loss(y_hat, y, x, use_pallas=True))
    ref = jax.block_until_ready(_pure_jax_loss(y_hat, y, x, True))
    assert jnp.allclose(loss, ref, rtol=1e-5, atol=1e-5), (loss, ref)

    # Test 2: ragged batch (padding path); monotone rows so the indicator fires
    # both ways (some gt_reg == 0 rows, some > 0).
    B2, T2 = 13, 128
    y2 = jnp.cumsum(jnp.abs(jax.random.normal(k4, (B2, T2), jnp.float32)), axis=-1)
    rand_rows = jax.random.normal(k5, (B2, T2), jnp.float32)
    y2 = y2.at[::2].set(rand_rows[::2])
    y_hat2 = jax.random.normal(k6, (B2, T2), jnp.float32)
    x2 = jnp.tile(jnp.array([[0.0, 1.0]], jnp.float32), (B2, 1))  # +ve speed
    loss2 = jax.block_until_ready(
        physical_regularization_loss(y_hat2, y2, x2, use_pallas=True))
    ref2 = jax.block_until_ready(_pure_jax_loss(y_hat2, y2, x2, True))
    assert jnp.allclose(loss2, ref2, rtol=1e-5, atol=1e-5), (loss2, ref2)

    # Test 3: multiple batch tiles AND multiple time tiles (boundary-carry
    # path), forced small tiles so the 2-D grid is exercised end to end.
    B3, T3 = 24, 512
    y3 = 0.05 * jnp.cumsum(jnp.abs(jax.random.normal(k7, (B3, T3), jnp.float32)),
                           axis=-1)                       # increasing -> gt_reg == 0
    y3 = y3.at[1::2].set(jax.random.normal(k8, (B3, T3), jnp.float32)[1::2])
    y_hat3 = jax.random.normal(k9, (B3, T3), jnp.float32)
    x3 = jnp.tile(jnp.array([[0.0, 1.0]], jnp.float32), (B3, 1))  # +ve speed
    loss3 = jax.block_until_ready(
        physical_regularization_loss(y_hat3, y3, x3, use_pallas=True,
                                     tile_rows=8, tile_cols=128))
    ref3 = jax.block_until_ready(_pure_jax_loss(y_hat3, y3, x3, True))
    assert jnp.allclose(loss3, ref3, rtol=1e-5, atol=1e-5), (loss3, ref3)

    print("KERNEL_OK")
</pallas_src>

<mosaic_0001>
module attributes {stable_mosaic.version = 11 : i64} {
  func.func @_phys_reg_kernel(%arg0: i32, %arg1: i32, %arg2: memref<16x128xf32, #tpu.memory_space<vmem>>, %arg3: memref<16x128xf32, #tpu.memory_space<vmem>>, %arg4: memref<16x1xf32, #tpu.memory_space<vmem>>, %arg5: memref<1x128xf32, #tpu.memory_space<vmem>>, %arg6: memref<1x8x128xf32, #tpu.memory_space<vmem>>, %arg7: memref<16x1xf32, #tpu.memory_space<vmem>>, %arg8: memref<16x1xf32, #tpu.memory_space<vmem>>, %arg9: memref<16x1xf32, #tpu.memory_space<vmem>>, %arg10: memref<16x1xf32, #tpu.memory_space<vmem>>, %arg11: memref<16x1xf32, #tpu.memory_space<vmem>>) attributes {dimension_semantics = [#tpu.dimension_semantics<parallel>, #tpu.dimension_semantics<arbitrary>], iteration_bounds = array<i64: 1, 1>, scalar_prefetch = 0 : i64, scratch_operands = 5 : i64, tpu.core_type = #tpu.core_type<tc>, window_params = [{transform_indices = @transform_0, window_bounds = array<i64: 16, 128>}, {transform_indices = @transform_1, window_bounds = array<i64: 16, 128>}, {transform_indices = @transform_2, window_bounds = array<i64: 16, 1>}, {transform_indices = @transform_3, window_bounds = array<i64: 1, 128>}, {transform_indices = @transform_4, window_bounds = array<i64: 1, 8, 128>}]} {
    %c0_i32 = arith.constant 0 : i32
    %0 = arith.cmpi eq, %arg1, %c0_i32 : i32
    %1 = arith.extui %0 : i1 to i32
    %c0_i32_0 = arith.constant 0 : i32
    %2 = arith.cmpi ne, %1, %c0_i32_0 : i32
    scf.if %2 {
      %cst_38 = arith.constant 0.000000e+00 : f32
      %71 = vector.broadcast %cst_38 : f32 to vector<16x1xf32>
      %c0_39 = arith.constant 0 : index
      %c0_40 = arith.constant 0 : index
      %72 = vector.load %arg7[%c0_39, %c0_40] : memref<16x1xf32, #tpu.memory_space<vmem>>, vector<16x1xf32>
      tpu.vector_store %arg7[%c0_39, %c0_40], %71 {strides = array<i32>} : memref<16x1xf32, #tpu.memory_space<vmem>>, vector<16x1xf32>,
      %cst_41 = arith.constant 0.000000e+00 : f32
      %73 = vector.broadcast %cst_41 : f32 to vector<16x1xf32>
      %c0_42 = arith.constant 0 : index
      %c0_43 = arith.constant 0 : index
      %74 = vector.load %arg8[%c0_42, %c0_43] : memref<16x1xf32, #tpu.memory_space<vmem>>, vector<16x1xf32>
      tpu.vector_store %arg8[%c0_42, %c0_43], %73 {strides = array<i32>} : memref<16x1xf32, #tpu.memory_space<vmem>>, vector<16x1xf32>,
      %cst_44 = arith.constant 0.000000e+00 : f32
      %75 = vector.broadcast %cst_44 : f32 to vector<16x1xf32>
      %c0_45 = arith.constant 0 : index
      %c0_46 = arith.constant 0 : index
      %76 = vector.load %arg9[%c0_45, %c0_46] : memref<16x1xf32, #tpu.memory_space<vmem>>, vector<16x1xf32>
      tpu.vector_store %arg9[%c0_45, %c0_46], %75 {strides = array<i32>} : memref<16x1xf32, #tpu.memory_space<vmem>>, vector<16x1xf32>,
      %cst_47 = arith.constant 0.000000e+00 : f32
      %77 = vector.broadcast %cst_47 : f32 to vector<16x1xf32>
      %c0_48 = arith.constant 0 : index
      %c0_49 = arith.constant 0 : index
      %78 = vector.load %arg10[%c0_48, %c0_49] : memref<16x1xf32, #tpu.memory_space<vmem>>, vector<16x1xf32>
      tpu.vector_store %arg10[%c0_48, %c0_49], %77 {strides = array<i32>} : memref<16x1xf32, #tpu.memory_space<vmem>>, vector<16x1xf32>,
      %cst_50 = arith.constant 0.000000e+00 : f32
      %79 = vector.broadcast %cst_50 : f32 to vector<16x1xf32>
      %c0_51 = arith.constant 0 : index
      %c0_52 = arith.constant 0 : index
      %80 = vector.load %arg11[%c0_51, %c0_52] : memref<16x1xf32, #tpu.memory_space<vmem>>, vector<16x1xf32>
      tpu.vector_store %arg11[%c0_51, %c0_52], %79 {strides = array<i32>} : memref<16x1xf32, #tpu.memory_space<vmem>>, vector<16x1xf32>,
    } else {
    }
    %c0 = arith.constant 0 : index
    %c0_1 = arith.constant 0 : index
    %3 = vector.load %arg2[%c0, %c0_1] : memref<16x128xf32, #tpu.memory_space<vmem>>, vector<16x128xf32>
    %c0_2 = arith.constant 0 : index
    %c0_3 = arith.constant 0 : index
    %4 = vector.load %arg3[%c0_2, %c0_3] : memref<16x128xf32, #tpu.memory_space<vmem>>, vector<16x128xf32>
    %c0_4 = arith.constant 0 : index
    %c0_5 = arith.constant 0 : index
    %5 = vector.load %arg4[%c0_4, %c0_5] : memref<16x1xf32, #tpu.memory_space<vmem>>, vector<16x1xf32>
    %c0_6 = arith.constant 0 : index
    %c0_7 = arith.constant 0 : index
    %6 = vector.load %arg5[%c0_6, %c0_7] : memref<1x128xf32, #tpu.memory_space<vmem>>, vector<1x128xf32>
    %7 = arith.subf %3, %4 : vector<16x128xf32>
    %c0_8 = arith.constant 0 : index
    %c0_9 = arith.constant 0 : index
    %8 = vector.load %arg7[%c0_8, %c0_9] : memref<16x1xf32, #tpu.memory_space<vmem>>, vector<16x1xf32>
    %9 = arith.mulf %7, %7 : vector<16x128xf32>
    %cst = arith.constant dense<0.000000e+00> : vector<16xf32>
    %10 = vector.multi_reduction <add>, %9, %cst [1] : vector<16x128xf32> to vector<16xf32>
    %11 = vector.shape_cast %10 : vector<16xf32> to vector<16x1xf32>
    %12 = arith.addf %8, %11 : vector<16x1xf32>
    %c0_10 = arith.constant 0 : index
    %c0_11 = arith.constant 0 : index
    %13 = vector.load %arg7[%c0_10, %c0_11] : memref<16x1xf32, #tpu.memory_space<vmem>>, vector<16x1xf32>
    tpu.vector_store %arg7[%c0_10, %c0_11], %12 {strides = array<i32>} : memref<16x1xf32, #tpu.memory_space<vmem>>, vector<16x1xf32>,
    %c0_i32_12 = arith.constant 0 : i32
    %14 = arith.cmpi sgt, %arg1, %c0_i32_12 : i32
    %c128_i32 = arith.constant 128 : i32
    %15 = arith.muli %arg1, %c128_i32 : i32
    %c64_i32 = arith.constant 64 : i32
    %16 = arith.cmpi slt, %15, %c64_i32 : i32
    %17 = arith.andi %14, %16 : i1
    %18 = arith.extui %17 : i1 to i32
    %19 = arith.sitofp %18 : i32 to f32
    %c0_13 = arith.constant 0 : index
    %c0_14 = arith.constant 0 : index
    %20 = vector.load %arg8[%c0_13, %c0_14] : memref<16x1xf32, #tpu.memory_space<vmem>>, vector<16x1xf32>
    %c127_i32 = arith.constant 127 : i32
    %21 = tpu.dynamic_rotate %4 by %c127_i32 dim 1 : vector<16x128xf32>, i32 -> vector<16x128xf32>
    %22 = arith.subf %21, %4 : vector<16x128xf32>
    %23 = vector.broadcast %5 : vector<16x1xf32> to vector<16x128xf32>
    %24 = arith.mulf %22, %23 : vector<16x128xf32>
    %cst_15 = arith.constant 0.000000e+00 : f32
    %25 = vector.broadcast %cst_15 : f32 to vector<16x128xf32>
    %26 = arith.maximumf %24, %25 : vector<16x128xf32>
    %27 = vector.broadcast %6 : vector<1x128xf32> to vector<16x128xf32>
    %28 = arith.mulf %26, %27 : vector<16x128xf32>
    %cst_16 = arith.constant dense<0.000000e+00> : vector<16xf32>
    %29 = vector.multi_reduction <add>, %28, %cst_16 [1] : vector<16x128xf32> to vector<16xf32>
    %30 = vector.shape_cast %29 : vector<16xf32> to vector<16x1xf32>
    %31 = vector.extract_strided_slice %4 {offsets = [0, 0], sizes = [16, 1], strides = [1, 1]} : vector<16x128xf32> to vector<16x1xf32>
    %c0_17 = arith.constant 0 : index
    %c0_18 = arith.constant 0 : index
    %32 = vector.load %arg10[%c0_17, %c0_18] : memref<16x1xf32, #tpu.memory_space<vmem>>, vector<16x1xf32>
    %33 = arith.subf %31, %32 : vector<16x1xf32>
    %34 = arith.mulf %33, %5 : vector<16x1xf32>
    %cst_19 = arith.constant 0.000000e+00 : f32
    %35 = vector.broadcast %cst_19 : f32 to vector<16x1xf32>
    %36 = arith.maximumf %34, %35 : vector<16x1xf32>
    %37 = vector.broadcast %19 : f32 to vector<16x1xf32>
    %38 = arith.mulf %36, %37 : vector<16x1xf32>
    %39 = arith.addf %30, %38 : vector<16x1xf32>
    %40 = vector.extract_strided_slice %4 {offsets = [0, 127], sizes = [16, 1], strides = [1, 1]} : vector<16x128xf32> to vector<16x1xf32>
    %c0_20 = arith.constant 0 : index
    %c0_21 = arith.constant 0 : index
    %41 = vector.load %arg10[%c0_20, %c0_21] : memref<16x1xf32, #tpu.memory_space<vmem>>, vector<16x1xf32>
    tpu.vector_store %arg10[%c0_20, %c0_21], %40 {strides = array<i32>} : memref<16x1xf32, #tpu.memory_space<vmem>>, vector<16x1xf32>,
    %42 = arith.addf %20, %39 : vector<16x1xf32>
    %c0_22 = arith.constant 0 : index
    %c0_23 = arith.constant 0 : index
    %43 = vector.load %arg8[%c0_22, %c0_23] : memref<16x1xf32, #tpu.memory_space<vmem>>, vector<16x1xf32>
    tpu.vector_store %arg8[%c0_22, %c0_23], %42 {strides = array<i32>} : memref<16x1xf32, #tpu.memory_space<vmem>>, vector<16x1xf32>,
    %c0_24 = arith.constant 0 : index
    %c0_25 = arith.constant 0 : index
    %44 = vector.load %arg9[%c0_24, %c0_25] : memref<16x1xf32, #tpu.memory_space<vmem>>, vector<16x1xf32>
    %c127_i32_26 = arith.constant 127 : i32
    %45 = tpu.dynamic_rotate %3 by %c127_i32_26 dim 1 : vector<16x128xf32>, i32 -> vector<16x128xf32>
    %46 = arith.subf %45, %3 : vector<16x128xf32>
    %47 = vector.broadcast %5 : vector<16x1xf32> to vector<16x128xf32>
    %48 = arith.mulf %46, %47 : vector<16x128xf32>
    %cst_27 = arith.constant 0.000000e+00 : f32
    %49 = vector.broadcast %cst_27 : f32 to vector<16x128xf32>
    %50 = arith.maximumf %48, %49 : vector<16x128xf32>
    %51 = vector.broadcast %6 : vector<1x128xf32> to vector<16x128xf32>
    %52 = arith.mulf %50, %51 : vector<16x128xf32>
    %cst_28 = arith.constant dense<0.000000e+00> : vector<16xf32>
    %53 = vector.multi_reduction <add>, %52, %cst_28 [1] : vector<16x128xf32> to vector<16xf32>
    %54 = vector.shape_cast %53 : vector<16xf32> to vector<16x1xf32>
    %55 = vector.extract_strided_slice %3 {offsets = [0, 0], sizes = [16, 1], strides = [1, 1]} : vector<16x128xf32> to vector<16x1xf32>
    %c0_29 = arith.constant 0 : index
    %c0_30 = arith.constant 0 : index
    %56 = vector.load %arg11[%c0_29, %c0_30] : memref<16x1xf32, #tpu.memory_space<vmem>>, vector<16x1xf32>
    %57 = arith.subf %55, %56 : vector<16x1xf32>
    %58 = arith.mulf %57, %5 : vector<16x1xf32>
    %cst_31 = arith.constant 0.000000e+00 : f32
    %59 = vector.broadcast %cst_31 : f32 to vector<16x1xf32>
    %60 = arith.maximumf %58, %59 : vector<16x1xf32>
    %61 = vector.broadcast %19 : f32 to vector<16x1xf32>
    %62 = arith.mulf %60, %61 : vector<16x1xf32>
    %63 = arith.addf %54, %62 : vector<16x1xf32>
    %64 = vector.extract_strided_slice %3 {offsets = [0, 127], sizes = [16, 1], strides = [1, 1]} : vector<16x128xf32> to vector<16x1xf32>
    %c0_32 = arith.constant 0 : index
    %c0_33 = arith.constant 0 : index
    %65 = vector.load %arg11[%c0_32, %c0_33] : memref<16x1xf32, #tpu.memory_space<vmem>>, vector<16x1xf32>
    tpu.vector_store %arg11[%c0_32, %c0_33], %64 {strides = array<i32>} : memref<16x1xf32, #tpu.memory_space<vmem>>, vector<16x1xf32>,
    %66 = arith.addf %44, %63 : vector<16x1xf32>
    %c0_34 = arith.constant 0 : index
    %c0_35 = arith.constant 0 : index
    %67 = vector.load %arg9[%c0_34, %c0_35] : memref<16x1xf32, #tpu.memory_space<vmem>>, vector<16x1xf32>
    tpu.vector_store %arg9[%c0_34, %c0_35], %66 {strides = array<i32>} : memref<16x1xf32, #tpu.memory_space<vmem>>, vector<16x1xf32>,
    %c0_i32_36 = arith.constant 0 : i32
    %68 = arith.cmpi eq, %arg1, %c0_i32_36 : i32
    %69 = arith.extui %68 : i1 to i32
    %c0_i32_37 = arith.constant 0 : i32
    %70 = arith.cmpi ne, %69, %c0_i32_37 : i32
    scf.if %70 {
      %c0_38 = arith.constant 0 : index
      %c0_39 = arith.constant 0 : index
      %71 = vector.load %arg8[%c0_38, %c0_39] : memref<16x1xf32, #tpu.memory_space<vmem>>, vector<16x1xf32>
      %cst_40 = arith.constant 0.000000e+00 : f32
      %72 = vector.broadcast %cst_40 : f32 to vector<16x1xf32>
      %73 = arith.cmpf oeq, %71, %72 : vector<16x1xf32>
      %cst_41 = arith.constant 1.000000e+00 : f32
      %cst_42 = arith.constant 0.000000e+00 : f32
      %74 = vector.broadcast %cst_41 : f32 to vector<16x1xf32>
      %75 = vector.broadcast %cst_42 : f32 to vector<16x1xf32>
      %76 = arith.select %73, %74, %75 : vector<16x1xi1>, vector<16x1xf32>
      %c0_43 = arith.constant 0 : index
      %c0_44 = arith.constant 0 : index
      %77 = vector.load %arg7[%c0_43, %c0_44] : memref<16x1xf32, #tpu.memory_space<vmem>>, vector<16x1xf32>
      %78 = vector.shape_cast %77 : vector<16x1xf32> to vector<1x16x1xf32>
      %cst_45 = arith.constant dense<0.000000e+00> : vector<1xf32>
      %79 = vector.multi_reduction <add>, %78, %cst_45 [1, 2] : vector<1x16x1xf32> to vector<1xf32>
      %80 = vector.shape_cast %79 : vector<1xf32> to vector<1x1x1xf32>
      %81 = vector.extract %80[0, 0, 0] : f32 from vector<1x1x1xf32>
      %c0_46 = arith.constant 0 : index
      %c0_47 = arith.constant 0 : index
      %82 = vector.load %arg9[%c0_46, %c0_47] : memref<16x1xf32, #tpu.memory_space<vmem>>, vector<16x1xf32>
      %83 = arith.mulf %76, %82 : vector<16x1xf32>
      %84 = vector.shape_cast %83 : vector<16x1xf32> to vector<1x16x1xf32>
      %cst_48 = arith.constant dense<0.000000e+00> : vector<1xf32>
      %85 = vector.multi_reduction <add>, %84, %cst_48 [1, 2] : vector<1x16x1xf32> to vector<1xf32>
      %86 = vector.shape_cast %85 : vector<1xf32> to vector<1x1x1xf32>
      %87 = vector.extract %86[0, 0, 0] : f32 from vector<1x1x1xf32>
      %88 = tpu.iota {dimensions = array<i32: 0>} : vector<8x128xi32>
      %89 = tpu.iota {dimensions = array<i32: 1>} : vector<8x128xi32>
      %c0_i32_49 = arith.constant 0 : i32
      %90 = vector.broadcast %c0_i32_49 : i32 to vector<8x128xi32>
      %91 = arith.cmpi eq, %88, %90 : vector<8x128xi32>
      %c0_i32_50 = arith.constant 0 : i32
      %92 = vector.broadcast %c0_i32_50 : i32 to vector<8x128xi32>
      %93 = arith.cmpi eq, %89, %92 : vector<8x128xi32>
      %94 = arith.andi %91, %93 : vector<8x128xi1>
      %c1_i32 = arith.constant 1 : i32
      %95 = vector.broadcast %c1_i32 : i32 to vector<8x128xi32>
      %96 = arith.cmpi eq, %89, %95 : vector<8x128xi32>
      %97 = arith.andi %91, %96 : vector<8x128xi1>
      %cst_51 = arith.constant 0.000000e+00 : f32
      %98 = vector.broadcast %87 : f32 to vector<8x128xf32>
      %99 = vector.broadcast %cst_51 : f32 to vector<8x128xf32>
      %100 = arith.select %97, %98, %99 : vector<8x128xi1>, vector<8x128xf32>
      %101 = vector.broadcast %81 : f32 to vector<8x128xf32>
      %102 = arith.select %94, %101, %100 : vector<8x128xi1>, vector<8x128xf32>
      %c0_52 = arith.constant 0 : index
      %c0_53 = arith.constant 0 : index
      %c0_54 = arith.constant 0 : index
      %103 = vector.load %arg6[%c0_52, %c0_53, %c0_54] : memref<1x8x128xf32, #tpu.memory_space<vmem>>, vector<1x8x128xf32>
      %104 = vector.shape_cast %103 : vector<1x8x128xf32> to vector<8x128xf32>
      %105 = vector.shape_cast %102 : vector<8x128xf32> to vector<1x8x128xf32>
      tpu.vector_store %arg6[%c0_52, %c0_53, %c0_54], %105 {strides = array<i32>} : memref<1x8x128xf32, #tpu.memory_space<vmem>>, vector<1x8x128xf32>,
    } else {
    }
    return
  }
  func.func @transform_0(%arg0: i32, %arg1: i32) -> (i32, i32) {
    %c0_i32 = arith.constant 0 : i32
    return %arg0, %arg1 : i32, i32
  }
  func.func @transform_1(%arg0: i32, %arg1: i32) -> (i32, i32) {
    %c0_i32 = arith.constant 0 : i32
    return %arg0, %arg1 : i32, i32
  }
  func.func @transform_2(%arg0: i32, %arg1: i32) -> (i32, i32) {
    %c0_i32 = arith.constant 0 : i32
    %c0_i32_0 = arith.constant 0 : i32
    return %arg0, %c0_i32 : i32, i32
  }
  func.func @transform_3(%arg0: i32, %arg1: i32) -> (i32, i32) {
    %c0_i32 = arith.constant 0 : i32
    %c0_i32_0 = arith.constant 0 : i32
    return %c0_i32, %arg1 : i32, i32
  }
  func.func @transform_4(%arg0: i32, %arg1: i32) -> (i32, i32, i32) {
    %c0_i32 = arith.constant 0 : i32
    %c0_i32_0 = arith.constant 0 : i32
    %c0_i32_1 = arith.constant 0 : i32
    return %arg0, %c0_i32, %c0_i32_0 : i32, i32, i32
  }
}

</mosaic_0001>

<llo_original>
// kernel: tpu_custom_call.1
$region0: #{tpu_custom_call.1}
  #allocation0 [shape = 'u32[]', space=smem, size = 0x4, offset = 0x4, fixed_abs, tag = 'smem constant byte address 0x4 - core index']
  #allocation1 [shape = 'u32[144,128]{1,0:T(1,128)}', space=vmem, size = 0x12000, scoped, tag = 'internal scratch']
  #allocation2 [shape = 'f32[16,1]{1,0:T(8,128)}', space=vmem, size = 0x2000, scoped, tag = 'scratch operand']
  #allocation3 [shape = 'f32[16,1]{1,0:T(8,128)}', space=vmem, size = 0x2000, scoped, tag = 'scratch operand']
  #allocation4 [shape = 'f32[16,1]{1,0:T(8,128)}', space=vmem, size = 0x2000, scoped, tag = 'scratch operand']
  #allocation5 [shape = 'f32[16,1]{1,0:T(8,128)}', space=vmem, size = 0x2000, scoped, tag = 'scratch operand']
  #allocation6 [shape = 'f32[16,1]{1,0:T(8,128)}', space=vmem, size = 0x2000, scoped, tag = 'scratch operand']
  %s0 = inlined_call_operand.vmem [shape: f32[16,128], index: 0, kind: input, shape index: {}]
  %s1 = inlined_call_operand.hbm [shape: f32[16,128], index: 1, kind: input, shape index: {}]
  %s2 = inlined_call_operand.vmem [shape: f32[16,1], index: 2, kind: input, shape index: {}]
  %s3 = inlined_call_operand.vmem [shape: f32[1,128], index: 3, kind: input, shape index: {}]
  %s4 = inlined_call_operand.hbm [shape: f32[1,8,128], index: 4, kind: output, shape index: {}]
  %s5 = sld [smem:[#allocation0]]
  $region38: #{tpu_custom_call.1} parent=0
    _
  %s7 = ssub.s32 1, %s5
  %s8 = scalar_select 0, %s7, %s5
  $region1: #{tpu_custom_call.1} parent=0
    #allocation7 [shape = 'u8[8192]{0}', space=vmem, size = 0x2000, scoped, tag = 'input window, operand 1, single buffered']
    #allocation8 [shape = 's32[1]{0}', space=sflag, size = 0x4, scoped, tag = 'scoped memory for tpu_custom_call.1']
    #allocation9 [shape = 's32[1]{0}', space=sflag, size = 0x4, scoped, tag = 'scoped memory for tpu_custom_call.1']
    #allocation10 [shape = 'u8[4096]{0}', space=vmem, size = 0x1000, scoped, tag = 'output window, operand 0, single buffered']
    %9 = vsyncpa [#allocation8], 0
    %10 = vsyncpa [#allocation9], 0
    // Predicated region
    $region2: #{tpu_custom_call.1} parent=1 // pred_check
      _
    $region3: #{tpu_custom_call.1} parent=1 // pred_check_branch
      %12 = sbr.rel (0) target = $region5
    $region4: #{tpu_custom_call.1} parent=1 // pred_region
      _
    $region5: #{tpu_custom_call.1} parent=1 // pred_fallthru
      _
    // Predicated region
    $region6: #{tpu_custom_call.1} parent=1 // pred_check
      _
    $region7: #{tpu_custom_call.1} parent=1 // pred_check_branch
      %14 = sbr.rel (0) target = $region9
    $region8: #{tpu_custom_call.1} parent=1 // pred_region
      %s16 = ssub.s32 256, 256
      %17 = vsyncadd [#allocation8], %s16
      %s18 = sshll.u32 [#allocation7], 4
      %s19 = int_to_ptr.vmem [resolvable:$true] %s18
      %24 = dma.hbm_to_vmem [thread:$0]  %s1, 256, %s19, [#allocation8], 128, 128, 8
    $region9: #{tpu_custom_call.1} parent=1 // pred_fallthru
      _
    // Predicated region
    $region10: #{tpu_custom_call.1} parent=1 // pred_check
      _
    $region11: #{tpu_custom_call.1} parent=1 // pred_check_branch
      %26 = sbr.rel (0) target = $region13
    $region12: #{tpu_custom_call.1} parent=1 // pred_region
      _
    $region13: #{tpu_custom_call.1} parent=1 // pred_fallthru
      _
    // Predicated region
    $region14: #{tpu_custom_call.1} parent=1 // pred_check
      _
    $region15: #{tpu_custom_call.1} parent=1 // pred_check_branch
      %28 = sbr.rel (0) target = $region17
    $region16: #{tpu_custom_call.1} parent=1 // pred_region
      _
    $region17: #{tpu_custom_call.1} parent=1 // pred_fallthru
      _
    // Predicated region
    $region18: #{tpu_custom_call.1} parent=1 // pred_check
      _
    $region19: #{tpu_custom_call.1} parent=1 // pred_check_branch
      %30 = sbr.rel (0) target = $region21
    $region20: #{tpu_custom_call.1} parent=1 // pred_region
      %31 = dma.done [#allocation8], 256
    $region21: #{tpu_custom_call.1} parent=1 // pred_fallthru
      _
    %p32 = scmp.eq.s32.totalorder 0, 0
    // Predicated region
    $region22: #{tpu_custom_call.1} parent=1 // pred_check
      %p33 = pneg %p32
    $region23: #{tpu_custom_call.1} parent=1 // pred_check_branch
      %35 = sbr.rel (%p33) target = $region25
    $region24: #{tpu_custom_call.1} parent=1 // pred_region
      %vm36 = vcmask 7168
      %37 = vst.msk [vmem:[#allocation2] sm:$0xff] %vm36, 0.0
      %38 = vst.msk [vmem:[#allocation2 + $0x8] sm:$0xff] %vm36, 0.0
      %39 = vst.msk [vmem:[#allocation3] sm:$0xff] %vm36, 0.0
      %40 = vst.msk [vmem:[#allocation3 + $0x8] sm:$0xff] %vm36, 0.0
      %41 = vst.msk [vmem:[#allocation4] sm:$0xff] %vm36, 0.0
      %42 = vst.msk [vmem:[#allocation4 + $0x8] sm:$0xff] %vm36, 0.0
      %43 = vst.msk [vmem:[#allocation5] sm:$0xff] %vm36, 0.0
      %44 = vst.msk [vmem:[#allocation5 + $0x8] sm:$0xff] %vm36, 0.0
      %45 = vst.msk [vmem:[#allocation6] sm:$0xff] %vm36, 0.0
      %46 = vst.msk [vmem:[#allocation6 + $0x8] sm:$0xff] %vm36, 0.0
    $region25: #{tpu_custom_call.1} parent=1 // pred_fallthru
      _
    %v47 = vld [vmem:[%s0] sm:$0xff]
    %v48 = vld [vmem:[%s0 + $0x8] sm:$0xff]
    %v49 = vld [vmem:[#allocation7] sm:$0xff]
    %v50 = vld [vmem:[#allocation7 + $0x8] sm:$0xff]
    %v51 = vld [vmem:[%s2] sm:$0xff]
    %v52 = vld [vmem:[%s2 + $0x8] sm:$0xff]
    %v53 = vld [vmem:[%s3] sm:$0x1]
    %v54 = vsub.f32 %v47, %v49
    %v55 = vsub.f32 %v48, %v50
    %v56 = vld [vmem:[#allocation2] sm:$0xff]
    %v57 = vld [vmem:[#allocation2 + $0x8] sm:$0xff]
    %v58 = vmul.f32 %v54, %v54
    %v59 = vmul.f32 %v55, %v55
    %60 = vadd.xlane.f32.xlu0 %v58
    %v61 = vpop.xlane.xlu0 %60
    %62 = vadd.xlane.f32.xlu0 %v59
    %v63 = vpop.xlane.xlu0 %62
    %v64 = vadd.f32 %v56, %v61
    %v65 = vadd.f32 %v57, %v63
    %vm66 = vcmask 7168
    %67 = vst.msk [vmem:[#allocation2] sm:$0xff] %vm66, %v64
    %68 = vst.msk [vmem:[#allocation2 + $0x8] sm:$0xff] %vm66, %v65
    %p69 = scmp.gt.s32.totalorder 0, 0
    %s70 = smul.u32 0, 128
    %p71 = scmp.lt.s32.totalorder %s70, 64
    %p72 = pnand %p69, %p71
    %p73 = pneg %p72
    %s74 = scalar_select %p73, 1, 0
    %s75 = scvt.s32.f32 %s74
    %v76 = vld [vmem:[#allocation3] sm:$0xff]
    %v77 = vld [vmem:[#allocation3 + $0x8] sm:$0xff]
    %78 = vrot.lane.b32.xlu0 %v49, 127
    %v79 = vpop.permute.xlu0 %78
    %80 = vrot.lane.b32.xlu0 %v50, 127
    %v81 = vpop.permute.xlu0 %80
    %v82 = vsub.f32 %v79, %v49
    %v83 = vsub.f32 %v81, %v50
    %85 = vset.pattern.permute.xlu0 0
    %86 = vperm.xlu0 %85, %v51
    %v87 = vpop.permute.xlu0 %86
    %90 = vset.pattern.permute.xlu0 0
    %91 = vperm.xlu0 %90, %v52
    %v92 = vpop.permute.xlu0 %91
    %v94 = vmul.f32 %v82, %v87
    %v95 = vmul.f32 %v83, %v92
    %v96 = vmax.f32 %v94, 0.0
    %v97 = vmax.f32 %v95, 0.0
    %v99 = vlaneseq
    %v100 = vshrl.u32 %v99, 7
    %v101 = vsub.s32 0, %v100
    %v102 = vrot.slane %v53, %v101
    %v104 = vmul.f32 %v96, %v102
    %v105 = vmul.f32 %v97, %v102
    %106 = vadd.xlane.f32.xlu0 %v104
    %v107 = vpop.xlane.xlu0 %106
    %108 = vadd.xlane.f32.xlu0 %v105
    %v109 = vpop.xlane.xlu0 %108
    %v110 = vld [vmem:[#allocation5] sm:$0xff]
    %v111 = vld [vmem:[#allocation5 + $0x8] sm:$0xff]
    %v112 = vsub.f32 %v49, %v110
    %v113 = vsub.f32 %v50, %v111
    %v114 = vmul.f32 %v112, %v51
    %v115 = vmul.f32 %v113, %v52
    %v116 = vmax.f32 %v114, 0.0
    %v117 = vmax.f32 %v115, 0.0
    %v118 = vstv %s75
    %v119 = vmul.f32 %v116, %v118
    %v120 = vmul.f32 %v117, %v118
    %v121 = vadd.f32 %v107, %v119
    %v122 = vadd.f32 %v109, %v120
    %125 = vrot.lane.b32.xlu0 %v49, 1
    %v126 = vpop.permute.xlu0 %125
    %127 = vrot.lane.b32.xlu0 %v50, 1
    %v128 = vpop.permute.xlu0 %127
    %131 = vst.msk [vmem:[#allocation5] sm:$0xff] %vm66, %v126
    %132 = vst.msk [vmem:[#allocation5 + $0x8] sm:$0xff] %vm66, %v128
    %v133 = vadd.f32 %v76, %v121
    %v134 = vadd.f32 %v77, %v122
    %135 = vst.msk [vmem:[#allocation3] sm:$0xff] %vm66, %v133
    %136 = vst.msk [vmem:[#allocation3 + $0x8] sm:$0xff] %vm66, %v134
    %v137 = vld [vmem:[#allocation4] sm:$0xff]
    %v138 = vld [vmem:[#allocation4 + $0x8] sm:$0xff]
    %139 = vrot.lane.b32.xlu0 %v47, 127
    %v140 = vpop.permute.xlu0 %139
    %141 = vrot.lane.b32.xlu0 %v48, 127
    %v142 = vpop.permute.xlu0 %141
    %v143 = vsub.f32 %v140, %v47
    %v144 = vsub.f32 %v142, %v48
    %v145 = vmul.f32 %v143, %v87
    %v146 = vmul.f32 %v144, %v92
    %v147 = vmax.f32 %v145, 0.0
    %v148 = vmax.f32 %v146, 0.0
    %v149 = vmul.f32 %v147, %v102
    %v150 = vmul.f32 %v148, %v102
    %151 = vadd.xlane.f32.xlu0 %v149
    %v152 = vpop.xlane.xlu0 %151
    %153 = vadd.xlane.f32.xlu0 %v150
    %v154 = vpop.xlane.xlu0 %153
    %v155 = vld [vmem:[#allocation6] sm:$0xff]
    %v156 = vld [vmem:[#allocation6 + $0x8] sm:$0xff]
    %v157 = vsub.f32 %v47, %v155
    %v158 = vsub.f32 %v48, %v156
    %v159 = vmul.f32 %v157, %v51
    %v160 = vmul.f32 %v158, %v52
    %v161 = vmax.f32 %v159, 0.0
    %v162 = vmax.f32 %v160, 0.0
    %v163 = vmul.f32 %v161, %v118
    %v164 = vmul.f32 %v162, %v118
    %v165 = vadd.f32 %v152, %v163
    %v166 = vadd.f32 %v154, %v164
    %169 = vrot.lane.b32.xlu0 %v47, 1
    %v170 = vpop.permute.xlu0 %169
    %171 = vrot.lane.b32.xlu0 %v48, 1
    %v172 = vpop.permute.xlu0 %171
    %175 = vst.msk [vmem:[#allocation6] sm:$0xff] %vm66, %v170
    %176 = vst.msk [vmem:[#allocation6 + $0x8] sm:$0xff] %vm66, %v172
    %v177 = vadd.f32 %v137, %v165
    %v178 = vadd.f32 %v138, %v166
    %179 = vst.msk [vmem:[#allocation4] sm:$0xff] %vm66, %v177
    %180 = vst.msk [vmem:[#allocation4 + $0x8] sm:$0xff] %vm66, %v178
    // Predicated region
    $region26: #{tpu_custom_call.1} parent=1 // pred_check
      %p181 = pneg %p32
    $region27: #{tpu_custom_call.1} parent=1 // pred_check_branch
      %183 = sbr.rel (%p181) target = $region29
    $region28: #{tpu_custom_call.1} parent=1 // pred_region
      %v184 = vld [vmem:[#allocation3] sm:$0xff]
      %v185 = vld [vmem:[#allocation3 + $0x8] sm:$0xff]
      %vm186 = vcmp.eq.f32.partialorder %v184, 0.0
      %vm187 = vcmp.eq.f32.partialorder %v185, 0.0
      %v188 = vsel %vm186, 1.0, 0.0
      %v189 = vsel %vm187, 1.0, 0.0
      %v190 = vld [vmem:[#allocation2] sm:$0xff]
      %v191 = vld [vmem:[#allocation2 + $0x8] sm:$0xff]
      %v192 = vsel %vm66, %v190, 0.0
      %v193 = vsel %vm66, %v191, 0.0
      %v194 = vadd.f32 %v192, %v193
      %195 = vadd.xlane.f32.xlu0 %v194
      %v196 = vpop.xlane.xlu0 %195
      %v197 = vrot.slane %v196, 4
      %v198 = vadd.f32 %v196, %v197
      %v199 = vrot.slane %v198, 2
      %v200 = vadd.f32 %v198, %v199
      %v201 = vrot.slane %v200, 1
      %v202 = vadd.f32 %v200, %v201
      %s203 = vtos %v202
      %v204 = vld [vmem:[#allocation4] sm:$0xff]
      %v205 = vld [vmem:[#allocation4 + $0x8] sm:$0xff]
      %v206 = vmul.f32 %v188, %v204
      %v207 = vmul.f32 %v189, %v205
      %v208 = vsel %vm66, %v206, 0.0
      %v209 = vsel %vm66, %v207, 0.0
      %v210 = vadd.f32 %v208, %v209
      %211 = vadd.xlane.f32.xlu0 %v210
      %v212 = vpop.xlane.xlu0 %211
      %v213 = vrot.slane %v212, 4
      %v214 = vadd.f32 %v212, %v213
      %v215 = vrot.slane %v214, 2
      %v216 = vadd.f32 %v214, %v215
      %v217 = vrot.slane %v216, 1
      %v218 = vadd.f32 %v216, %v217
      %s219 = vtos %v218
      %v220 = vlaneseq
      %v221 = vshrl.u32 %v220, 7
      %v222 = vlaneseq
      %v223 = vand.u32 %v222, 127
      %vm224 = vcmp.eq.s32.totalorder %v221, 0
      %vm225 = vcmp.eq.s32.totalorder %v223, 0
      %vm226 = vmand %vm224, %vm225
      %vm227 = vcmp.eq.s32.totalorder %v223, 1
      %vm228 = vmand %vm224, %vm227
      %v229 = vstv %s219
      %v230 = vsel %vm228, %v229, 0.0
      %v231 = vstv %s203
      %v232 = vsel %vm226, %v231, %v230
      %233 = vst [vmem:[#allocation10] sm:$0xff] %v232
    $region29: #{tpu_custom_call.1} parent=1 // pred_fallthru
      _
    // Predicated region
    $region30: #{tpu_custom_call.1} parent=1 // pred_check
      _
    $region31: #{tpu_custom_call.1} parent=1 // pred_check_branch
      %235 = sbr.rel (0) target = $region33
    $region32: #{tpu_custom_call.1} parent=1 // pred_region
      %s237 = ssub.s32 128, 128
      %238 = vsyncadd [#allocation9], %s237
      %s240 = sshll.u32 [#allocation10], 4
      %s241 = int_to_ptr.vmem [resolvable:$true] %s240
      %243 = dma.vmem_to_hbm [thread:$0]  %s241, 128, %s4, [#allocation9]
    $region33: #{tpu_custom_call.1} parent=1 // pred_fallthru
      _
    // Predicated region
    $region34: #{tpu_custom_call.1} parent=1 // pred_check
      _
    $region35: #{tpu_custom_call.1} parent=1 // pred_check_branch
      %245 = sbr.rel (0) target = $region37
    $region36: #{tpu_custom_call.1} parent=1 // pred_region
      %246 = dma.done [#allocation9], 128
    $region37: #{tpu_custom_call.1} parent=1 // pred_fallthru
      _
    %247 = vsyncpa [#allocation8], 1
    %248 = vsyncpa [#allocation9], 1

</llo_original>
